<compile_context>
chip_gen: v6e
topology: v6e:2x2x1
jax: 0.10.0
libtpu: 0.0.40
codegen_flags: <defaults>
</compile_context>

<pallas_src>
import jax
import jax.numpy as jnp
from jax.experimental import pallas as pl
from jax.experimental.pallas import tpu as pltpu

SCALE = 0.9793241061191791

# ---- hyperparameters (see TODO above) -------------------------------------------
IN_FEATURES = 1024   # Linear in_features   (matches the module's __init__)
OUT_FEATURES = 1     # Linear out_features  (module says 2; forced to 1 -- see TODO)
C_IN = 1             # Conv2d in_channels   (module says 3; forced to batch==1 -- TODO)
C_OUT = 8            # Conv2d out_channels  (matches the module)
B = 1                # batch (must equal C_IN for the unbatched 3-D conv input)
S = 2                # x1 "row" dim: 1 + S must equal the conv output height (3)
H2 = W2 = 6          # x2 spatial dims (adaptive_avg_pool2d -> [1,1] pools all of it)


def _forward_kernel(x2_ref, wl_ref, scal_ref, wcbc_ref, out_ref):
    """Whole fused forward pass (single gridless invocation).

    x2_ref  : (H*W, C)      f32 VMEM  x2 lane-dense: spatial on sublanes, channels on lanes
    wl_ref  : (F, C)        f32 VMEM  Linear weight (F == 1)
    scal_ref: (3,)          f32 SMEM  [x1[0], x1[1], b_lin]  (all scalars, F == 1)
    wcbc_ref: (C_out, 2)    f32 VMEM  column 0 = 1x1 conv weight, column 1 = conv bias
    out_ref : (C_out, 9)    f32 VMEM  v7 with the (3, 3) spatial dims flattened
    """
    # ---- adaptive_avg_pool2d(x2, [1,1]) + reshape: mean over the spatial (sublane) axis
    pooled = jnp.mean(x2_ref[...], axis=0, keepdims=True)                      # (1, C)

    # ---- Linear (M == 1): VPU multiply + one cross-lane reduce -- no MXU round-trip
    v2 = jnp.sum(pooled * wl_ref[...], axis=1, keepdims=True) + scal_ref[2]    # (1, 1)

    # ---- v3 = cat([v2.unsqueeze(1), x1], dim=1);  v4 = v3[:, 0, :] == v2 (F == 1)
    # ---- Conv2d(C_in=1, C_out, kernel=1, stride=1, padding=1) on a (1, 1, F) map:
    #      only the centre pixel (row 1, col 1 -> flat lane 4 of the 3x3 output)
    #      receives wc * v4; every other output pixel is just the bias.
    wc = wcbc_ref[:, 0:1]                                                      # (C_out, 1)
    bc = wcbc_ref[:, 1:2]                                                      # (C_out, 1)
    core = wc * v2                                                             # (C_out, 1)
    lane = jax.lax.broadcasted_iota(jnp.int32, (1, 9), 1)
    center = (lane == 4).astype(jnp.float32)                                   # constant mask
    v5 = bc + core * center                                                    # (C_out, 9)

    # ---- v6 = v3 * SCALE, flattened over (3, 3):  v6_flat[j] = SCALE * v3[j // 3]
    #      v3[0] = v2, v3[1] = x1[0], v3[2] = x1[1]  (x1 scalars come from SMEM)
    row1 = (lane >= 3) & (lane < 6)
    x1_0 = scal_ref[0]
    x1_1 = scal_ref[1]
    v3_flat = jnp.where(lane < 3, v2, jnp.where(row1, x1_0, x1_1))             # (1, 9)

    # ---- v7 = v5 * v6  (broadcast over C_out)
    out_ref[...] = v5 * (SCALE * v3_flat)


def model_forward(x1, x2, w_lin, b_lin, w_conv, b_conv):
    b, c, h2, w2 = x2.shape
    f = w_lin.shape[0]
    s = x1.shape[1]
    c_out, c_in = w_conv.shape[0], w_conv.shape[1]
    assert b == 1 and x1.shape[0] == 1
    assert f == 1 and c_in == b                     # required for a well-typed forward
    hp, wp = 3, f + 2                               # conv output of a (1, f) map, pad=1
    assert 1 + s == hp and (hp, wp) == (3, 3)       # required for the v5 * v6 broadcast

    # lane-dense x2: spatial on sublanes, channels on lanes (144 KiB wrapper transpose,
    # negligible; ideally the producer would emit x2 in HWC directly)
    x2_hwc = jnp.transpose(x2[0], (1, 2, 0)).reshape(h2 * w2, c)    # (H*W, C)
    wl = w_lin.reshape(f, c)                                        # (1, C)
    scalars = jnp.concatenate([x1.reshape(s), b_lin.reshape(f)])    # (3,) -> SMEM
    wcbc = jnp.concatenate([w_conv.reshape(c_out, c_in),
                            b_conv.reshape(c_out, 1)], axis=1)      # (C_out, 2)

    bytes_accessed = 4 * (x2_hwc.size + wl.size + wcbc.size
                          + scalars.size + c_out * hp * wp)
    flops = 2 * c * h2 * w2 + 2 * c + 3 * c_out * hp * wp

    out_flat = pl.pallas_call(
        _forward_kernel,
        out_shape=jax.ShapeDtypeStruct((c_out, hp * wp), jnp.float32),
        in_specs=[
            pl.BlockSpec(memory_space=pltpu.MemorySpace.VMEM),   # x2 (H*W, C), lane-dense
            pl.BlockSpec(memory_space=pltpu.MemorySpace.VMEM),   # wl (1, C)
            pl.BlockSpec(memory_space=pltpu.MemorySpace.SMEM),   # [x1_0, x1_1, b_lin]
            pl.BlockSpec(memory_space=pltpu.MemorySpace.VMEM),   # packed wc|bc (C_out, 2)
        ],
        out_specs=pl.BlockSpec(memory_space=pltpu.MemorySpace.VMEM),
        compiler_params=pltpu.CompilerParams(vmem_limit_bytes=4 << 20),
        cost_estimate=pl.CostEstimate(flops=flops,
                                      transcendentals=0,
                                      bytes_accessed=bytes_accessed),
    )(x2_hwc, wl, scalars, wcbc)

    return out_flat.reshape(c_out, hp, wp)          # 288 B reshape, free


def forward_ref(x1, x2, w_lin, b_lin, w_conv, b_conv):
    """Pure-JAX reference mirroring the PyTorch forward op-by-op."""
    bsz = x2.shape[0]
    v1 = jnp.mean(x2, axis=(2, 3)).reshape(bsz, -1)          # adaptive_avg_pool2d + reshape
    v2 = v1 @ w_lin.T + b_lin                                # Linear
    v3 = jnp.concatenate([v2[:, None, :], x1], axis=1)       # cat dim=1
    v4 = v3[:, 0, :]                                         # slice
    conv_in = v4[:, None, :]                                 # unsqueeze(1): unbatched (C,H,W)
    padded = jnp.pad(conv_in, ((0, 0), (1, 1), (1, 1)))      # Conv2d padding=1
    v5 = jnp.einsum("oc,chw->ohw",
                    w_conv.reshape(w_conv.shape[0], -1), padded) + b_conv[:, None, None]
    v6 = v3 * SCALE
    return v5 * v6                                           # (C_out,3,3) * (1,3,1)


if __name__ == "__main__":
    key = jax.random.PRNGKey(0)
    k1, k2, k3, k4, k5, k6 = jax.random.split(key, 6)
    # deterministic synthetic parameters (shapes from the module's __init__, scaled per TODO)
    w_lin = 0.02 * jax.random.normal(k1, (OUT_FEATURES, IN_FEATURES), jnp.float32)
    b_lin = 0.02 * jax.random.normal(k2, (OUT_FEATURES,), jnp.float32)
    w_conv = 0.1 * jax.random.normal(k3, (C_OUT, C_IN, 1, 1), jnp.float32)
    b_conv = 0.1 * jax.random.normal(k4, (C_OUT,), jnp.float32)
    # inputs
    x1 = jax.random.normal(k5, (B, S, OUT_FEATURES), jnp.float32)
    x2 = jax.random.normal(k6, (B, IN_FEATURES, H2, W2), jnp.float32)

    v7 = jax.jit(model_forward)(x1, x2, w_lin, b_lin, w_conv, b_conv)
    v7 = jax.block_until_ready(v7)

    v7_ref = forward_ref(x1, x2, w_lin, b_lin, w_conv, b_conv)
    assert v7.shape == (C_OUT, 3, 3)
    assert jnp.allclose(v7, v7_ref, atol=1e-5, rtol=1e-5)
    print("KERNEL_OK")
</pallas_src>

<mosaic_0001>
module attributes {stable_mosaic.version = 11 : i64} {
  func.func @_forward_kernel(%arg0: memref<36x1024xf32, #tpu.memory_space<vmem>>, %arg1: memref<1x1024xf32, #tpu.memory_space<vmem>>, %arg2: memref<3xf32, #tpu.memory_space<smem>>, %arg3: memref<8x2xf32, #tpu.memory_space<vmem>>, %arg4: memref<8x9xf32, #tpu.memory_space<vmem>>) attributes {dimension_semantics = [], scalar_prefetch = 0 : i64, scratch_operands = 0 : i64, tpu.core_type = #tpu.core_type<tc>} {
    %c0 = arith.constant 0 : index
    %c0_0 = arith.constant 0 : index
    %0 = vector.load %arg0[%c0, %c0_0] : memref<36x1024xf32, #tpu.memory_space<vmem>>, vector<36x1024xf32>
    %cst = arith.constant dense<0.000000e+00> : vector<1024xf32>
    %1 = vector.multi_reduction <add>, %0, %cst [0] : vector<36x1024xf32> to vector<1024xf32>
    %2 = vector.shape_cast %1 : vector<1024xf32> to vector<1x1024xf32>
    %cst_1 = arith.constant 3.600000e+01 : f32
    %3 = vector.broadcast %cst_1 : f32 to vector<1x1024xf32>
    %4 = arith.divf %2, %3 : vector<1x1024xf32>
    %c0_2 = arith.constant 0 : index
    %c0_3 = arith.constant 0 : index
    %5 = vector.load %arg1[%c0_2, %c0_3] : memref<1x1024xf32, #tpu.memory_space<vmem>>, vector<1x1024xf32>
    %6 = arith.mulf %4, %5 : vector<1x1024xf32>
    %cst_4 = arith.constant dense<0.000000e+00> : vector<1xf32>
    %7 = vector.multi_reduction <add>, %6, %cst_4 [1] : vector<1x1024xf32> to vector<1xf32>
    %8 = vector.shape_cast %7 : vector<1xf32> to vector<1x1xf32>
    %c2 = arith.constant 2 : index
    %9 = memref.load %arg2[%c2] : memref<3xf32, #tpu.memory_space<smem>>
    %10 = vector.broadcast %9 : f32 to vector<1x1xf32>
    %11 = arith.addf %8, %10 : vector<1x1xf32>
    %c0_5 = arith.constant 0 : index
    %c0_6 = arith.constant 0 : index
    %12 = vector.load %arg3[%c0_5, %c0_6] : memref<8x2xf32, #tpu.memory_space<vmem>>, vector<8x1xf32>
    %c0_7 = arith.constant 0 : index
    %c1 = arith.constant 1 : index
    %13 = vector.load %arg3[%c0_7, %c1] : memref<8x2xf32, #tpu.memory_space<vmem>>, vector<8x1xf32>
    %14 = vector.broadcast %11 : vector<1x1xf32> to vector<8x1xf32>
    %15 = arith.mulf %12, %14 : vector<8x1xf32>
    %16 = tpu.iota {dimensions = array<i32: 1>} : vector<1x9xi32>
    %c4_i32 = arith.constant 4 : i32
    %17 = vector.broadcast %c4_i32 : i32 to vector<1x9xi32>
    %18 = arith.cmpi eq, %16, %17 : vector<1x9xi32>
    %19 = arith.extui %18 : vector<1x9xi1> to vector<1x9xi32>
    %20 = arith.sitofp %19 : vector<1x9xi32> to vector<1x9xf32>
    %21 = vector.broadcast %15 : vector<8x1xf32> to vector<8x9xf32>
    %22 = vector.broadcast %20 : vector<1x9xf32> to vector<8x9xf32>
    %23 = arith.mulf %21, %22 : vector<8x9xf32>
    %24 = vector.broadcast %13 : vector<8x1xf32> to vector<8x9xf32>
    %25 = arith.addf %24, %23 : vector<8x9xf32>
    %c3_i32 = arith.constant 3 : i32
    %26 = vector.broadcast %c3_i32 : i32 to vector<1x9xi32>
    %27 = arith.cmpi sge, %16, %26 : vector<1x9xi32>
    %c6_i32 = arith.constant 6 : i32
    %28 = vector.broadcast %c6_i32 : i32 to vector<1x9xi32>
    %29 = arith.cmpi slt, %16, %28 : vector<1x9xi32>
    %30 = arith.andi %27, %29 : vector<1x9xi1>
    %c0_8 = arith.constant 0 : index
    %31 = memref.load %arg2[%c0_8] : memref<3xf32, #tpu.memory_space<smem>>
    %c1_9 = arith.constant 1 : index
    %32 = memref.load %arg2[%c1_9] : memref<3xf32, #tpu.memory_space<smem>>
    %c3_i32_10 = arith.constant 3 : i32
    %33 = vector.broadcast %c3_i32_10 : i32 to vector<1x9xi32>
    %34 = arith.cmpi slt, %16, %33 : vector<1x9xi32>
    %35 = vector.broadcast %31 : f32 to vector<1x9xf32>
    %36 = vector.broadcast %32 : f32 to vector<1x9xf32>
    %37 = arith.select %30, %35, %36 : vector<1x9xi1>, vector<1x9xf32>
    %38 = vector.shape_cast %11 : vector<1x1xf32> to vector<1x1xf32>
    %39 = vector.broadcast %38 : vector<1x1xf32> to vector<1x9xf32>
    %40 = arith.select %34, %39, %37 : vector<1x9xi1>, vector<1x9xf32>
    %cst_11 = arith.constant 0.979324102 : f32
    %41 = vector.broadcast %cst_11 : f32 to vector<1x9xf32>
    %42 = arith.mulf %41, %40 : vector<1x9xf32>
    %43 = vector.broadcast %42 : vector<1x9xf32> to vector<8x9xf32>
    %44 = arith.mulf %25, %43 : vector<8x9xf32>
    %c0_12 = arith.constant 0 : index
    %c0_13 = arith.constant 0 : index
    %45 = vector.load %arg4[%c0_12, %c0_13] : memref<8x9xf32, #tpu.memory_space<vmem>>, vector<8x9xf32>
    tpu.vector_store %arg4[%c0_12, %c0_13], %44 {strides = array<i32>} : memref<8x9xf32, #tpu.memory_space<vmem>>, vector<8x9xf32>,
    return
  }
}

</mosaic_0001>

<llo_original>
// kernel: model_forward.1
$region0: #{model_forward.1}
  #allocation0 [shape = 'u32[]', space=smem, size = 0x4, offset = 0x4, fixed_abs, tag = 'smem constant byte address 0x4 - core index']
  #allocation1 [shape = 'u32[144,128]{1,0:T(1,128)}', space=vmem, size = 0x12000, scoped, tag = 'internal scratch']
  %s0 = inlined_call_operand.vmem [shape: f32[36,1024], index: 0, kind: input, shape index: {}]
  %s1 = inlined_call_operand.vmem [shape: f32[1,1024], index: 1, kind: input, shape index: {}]
  %s2 = inlined_call_operand.vmem [shape: f32[3], index: 2, kind: input, shape index: {}]
  %s3 = inlined_call_operand.vmem [shape: f32[8,2], index: 3, kind: input, shape index: {}]
  %s4 = inlined_call_operand.vmem [shape: f32[8,9], index: 4, kind: output, shape index: {}]
  %s5 = sld [smem:[#allocation0]]
  $region30: #{model_forward.1} parent=0
    _
  %s7 = ssub.s32 1, %s5
  %s8 = scalar_select 0, %s7, %s5
  $region1: #{model_forward.1} parent=0
    #allocation2 [shape = 'u8[512]{0}', space=smem, size = 0x200, scoped, tag = 'input window, operand 2, single buffered']
    #allocation3 [shape = 's32[1]{0}', space=sflag, size = 0x4, scoped, tag = 'scoped memory for model_forward.1']
    %9 = vsyncpa [#allocation3], 0
    // Predicated region
    $region2: #{model_forward.1} parent=1 // pred_check
      _
    $region3: #{model_forward.1} parent=1 // pred_check_branch
      %11 = sbr.rel (0) target = $region5
    $region4: #{model_forward.1} parent=1 // pred_region
      _
    $region5: #{model_forward.1} parent=1 // pred_fallthru
      _
    // Predicated region
    $region6: #{model_forward.1} parent=1 // pred_check
      _
    $region7: #{model_forward.1} parent=1 // pred_check_branch
      %13 = sbr.rel (0) target = $region9
    $region8: #{model_forward.1} parent=1 // pred_region
      _
    $region9: #{model_forward.1} parent=1 // pred_fallthru
      _
    // Predicated region
    $region10: #{model_forward.1} parent=1 // pred_check
      _
    $region11: #{model_forward.1} parent=1 // pred_check_branch
      %15 = sbr.rel (0) target = $region13
    $region12: #{model_forward.1} parent=1 // pred_region
      %s17 = ssub.s32 16, 16
      %18 = vsyncadd [#allocation3], %s17
      %s20 = sshll.u32 %s2, 4
      %s21 = int_to_ptr.vmem [resolvable:$true] %s20
      %23 = dma.vmem_to_smem %s21, 16, [#allocation2], [#allocation3]
    $region13: #{model_forward.1} parent=1 // pred_fallthru
      _
    // Predicated region
    $region14: #{model_forward.1} parent=1 // pred_check
      _
    $region15: #{model_forward.1} parent=1 // pred_check_branch
      %25 = sbr.rel (0) target = $region17
    $region16: #{model_forward.1} parent=1 // pred_region
      _
    $region17: #{model_forward.1} parent=1 // pred_fallthru
      _
    // Predicated region
    $region18: #{model_forward.1} parent=1 // pred_check
      _
    $region19: #{model_forward.1} parent=1 // pred_check_branch
      %27 = sbr.rel (0) target = $region21
    $region20: #{model_forward.1} parent=1 // pred_region
      %28 = dma.done [#allocation3], 16
    $region21: #{model_forward.1} parent=1 // pred_fallthru
      _
    %29 = sfence
    %v30 = vld [vmem:[%s0] sm:$0xff]
    %v31 = vld [vmem:[%s0 + $0x8] sm:$0xff]
    %v32 = vld [vmem:[%s0 + $0x10] sm:$0xff]
    %v33 = vld [vmem:[%s0 + $0x18] sm:$0xff]
    %v34 = vld [vmem:[%s0 + $0x20] sm:$0xff]
    %v35 = vld [vmem:[%s0 + $0x28] sm:$0xff]
    %v36 = vld [vmem:[%s0 + $0x30] sm:$0xff]
    %v37 = vld [vmem:[%s0 + $0x38] sm:$0xff]
    %v38 = vld [vmem:[%s0 + $0x40] sm:$0xff]
    %v39 = vld [vmem:[%s0 + $0x48] sm:$0xff]
    %v40 = vld [vmem:[%s0 + $0x50] sm:$0xff]
    %v41 = vld [vmem:[%s0 + $0x58] sm:$0xff]
    %v42 = vld [vmem:[%s0 + $0x60] sm:$0xff]
    %v43 = vld [vmem:[%s0 + $0x68] sm:$0xff]
    %v44 = vld [vmem:[%s0 + $0x70] sm:$0xff]
    %v45 = vld [vmem:[%s0 + $0x78] sm:$0xff]
    %v46 = vld [vmem:[%s0 + $0x80] sm:$0xff]
    %v47 = vld [vmem:[%s0 + $0x88] sm:$0xff]
    %v48 = vld [vmem:[%s0 + $0x90] sm:$0xff]
    %v49 = vld [vmem:[%s0 + $0x98] sm:$0xff]
    %v50 = vld [vmem:[%s0 + $0xa0] sm:$0xff]
    %v51 = vld [vmem:[%s0 + $0xa8] sm:$0xff]
    %v52 = vld [vmem:[%s0 + $0xb0] sm:$0xff]
    %v53 = vld [vmem:[%s0 + $0xb8] sm:$0xff]
    %v54 = vld [vmem:[%s0 + $0xc0] sm:$0xff]
    %v55 = vld [vmem:[%s0 + $0xc8] sm:$0xff]
    %v56 = vld [vmem:[%s0 + $0xd0] sm:$0xff]
    %v57 = vld [vmem:[%s0 + $0xd8] sm:$0xff]
    %v58 = vld [vmem:[%s0 + $0xe0] sm:$0xff]
    %v59 = vld [vmem:[%s0 + $0xe8] sm:$0xff]
    %v60 = vld [vmem:[%s0 + $0xf0] sm:$0xff]
    %v61 = vld [vmem:[%s0 + $0xf8] sm:$0xff]
    %v62 = vld [vmem:[%s0 + $0x100] sm:$0xf]
    %v63 = vld [vmem:[%s0 + $0x108] sm:$0xf]
    %v64 = vld [vmem:[%s0 + $0x110] sm:$0xf]
    %v65 = vld [vmem:[%s0 + $0x118] sm:$0xf]
    %v66 = vld [vmem:[%s0 + $0x120] sm:$0xf]
    %v67 = vld [vmem:[%s0 + $0x128] sm:$0xf]
    %v68 = vld [vmem:[%s0 + $0x130] sm:$0xf]
    %v69 = vld [vmem:[%s0 + $0x138] sm:$0xf]
    %v70 = vadd.f32 %v30, %v38
    %v71 = vadd.f32 %v70, %v46
    %v72 = vadd.f32 %v71, %v54
    %vm73 = vcmask 1043456
    %v74 = vsel %vm73, %v62, 0.0
    %v75 = vadd.f32 %v72, %v74
    %v76 = vrot.slane %v75, 4
    %v77 = vadd.f32 %v75, %v76
    %v78 = vrot.slane %v77, 2
    %v79 = vadd.f32 %v77, %v78
    %v80 = vrot.slane %v79, 1
    %v81 = vadd.f32 %v79, %v80
    %v82 = vadd.f32 %v31, %v39
    %v83 = vadd.f32 %v82, %v47
    %v84 = vadd.f32 %v83, %v55
    %v85 = vsel %vm73, %v63, 0.0
    %v86 = vadd.f32 %v84, %v85
    %v87 = vrot.slane %v86, 4
    %v88 = vadd.f32 %v86, %v87
    %v89 = vrot.slane %v88, 2
    %v90 = vadd.f32 %v88, %v89
    %v91 = vrot.slane %v90, 1
    %v92 = vadd.f32 %v90, %v91
    %v93 = vadd.f32 %v32, %v40
    %v94 = vadd.f32 %v93, %v48
    %v95 = vadd.f32 %v94, %v56
    %v96 = vsel %vm73, %v64, 0.0
    %v97 = vadd.f32 %v95, %v96
    %v98 = vrot.slane %v97, 4
    %v99 = vadd.f32 %v97, %v98
    %v100 = vrot.slane %v99, 2
    %v101 = vadd.f32 %v99, %v100
    %v102 = vrot.slane %v101, 1
    %v103 = vadd.f32 %v101, %v102
    %v104 = vadd.f32 %v33, %v41
    %v105 = vadd.f32 %v104, %v49
    %v106 = vadd.f32 %v105, %v57
    %v107 = vsel %vm73, %v65, 0.0
    %v108 = vadd.f32 %v106, %v107
    %v109 = vrot.slane %v108, 4
    %v110 = vadd.f32 %v108, %v109
    %v111 = vrot.slane %v110, 2
    %v112 = vadd.f32 %v110, %v111
    %v113 = vrot.slane %v112, 1
    %v114 = vadd.f32 %v112, %v113
    %v115 = vadd.f32 %v34, %v42
    %v116 = vadd.f32 %v115, %v50
    %v117 = vadd.f32 %v116, %v58
    %v118 = vsel %vm73, %v66, 0.0
    %v119 = vadd.f32 %v117, %v118
    %v120 = vrot.slane %v119, 4
    %v121 = vadd.f32 %v119, %v120
    %v122 = vrot.slane %v121, 2
    %v123 = vadd.f32 %v121, %v122
    %v124 = vrot.slane %v123, 1
    %v125 = vadd.f32 %v123, %v124
    %v126 = vadd.f32 %v35, %v43
    %v127 = vadd.f32 %v126, %v51
    %v128 = vadd.f32 %v127, %v59
    %v129 = vsel %vm73, %v67, 0.0
    %v130 = vadd.f32 %v128, %v129
    %v131 = vrot.slane %v130, 4
    %v132 = vadd.f32 %v130, %v131
    %v133 = vrot.slane %v132, 2
    %v134 = vadd.f32 %v132, %v133
    %v135 = vrot.slane %v134, 1
    %v136 = vadd.f32 %v134, %v135
    %v137 = vadd.f32 %v36, %v44
    %v138 = vadd.f32 %v137, %v52
    %v139 = vadd.f32 %v138, %v60
    %v140 = vsel %vm73, %v68, 0.0
    %v141 = vadd.f32 %v139, %v140
    %v142 = vrot.slane %v141, 4
    %v143 = vadd.f32 %v141, %v142
    %v144 = vrot.slane %v143, 2
    %v145 = vadd.f32 %v143, %v144
    %v146 = vrot.slane %v145, 1
    %v147 = vadd.f32 %v145, %v146
    %v148 = vadd.f32 %v37, %v45
    %v149 = vadd.f32 %v148, %v53
    %v150 = vadd.f32 %v149, %v61
    %v151 = vsel %vm73, %v69, 0.0
    %v152 = vadd.f32 %v150, %v151
    %v153 = vrot.slane %v152, 4
    %v154 = vadd.f32 %v152, %v153
    %v155 = vrot.slane %v154, 2
    %v156 = vadd.f32 %v154, %v155
    %v157 = vrot.slane %v156, 1
    %v158 = vadd.f32 %v156, %v157
    %v159 = vrcp.pop 36.0
    %v160 = vmul.f32 %v81, %v159
    %v161 = vmul.f32 %v92, %v159
    %v162 = vmul.f32 %v103, %v159
    %v163 = vmul.f32 %v114, %v159
    %v164 = vmul.f32 %v125, %v159
    %v165 = vmul.f32 %v136, %v159
    %v166 = vmul.f32 %v147, %v159
    %v167 = vmul.f32 %v158, %v159
    %v168 = vld [vmem:[%s1] sm:$0xff]
    %v170 = vlaneseq
    %v171 = vshrl.u32 %v170, 7
    %v172 = vsub.s32 0, %v171
    %v173 = vrot.slane %v168, %v172
    %v174 = vlaneseq
    %v175 = vshrl.u32 %v174, 7
    %v176 = vsub.s32 1, %v175
    %v177 = vrot.slane %v168, %v176
    %v178 = vlaneseq
    %v179 = vshrl.u32 %v178, 7
    %v180 = vsub.s32 2, %v179
    %v181 = vrot.slane %v168, %v180
    %v182 = vlaneseq
    %v183 = vshrl.u32 %v182, 7
    %v184 = vsub.s32 3, %v183
    %v185 = vrot.slane %v168, %v184
    %v186 = vlaneseq
    %v187 = vshrl.u32 %v186, 7
    %v188 = vsub.s32 4, %v187
    %v189 = vrot.slane %v168, %v188
    %v190 = vlaneseq
    %v191 = vshrl.u32 %v190, 7
    %v192 = vsub.s32 5, %v191
    %v193 = vrot.slane %v168, %v192
    %v194 = vlaneseq
    %v195 = vshrl.u32 %v194, 7
    %v196 = vsub.s32 6, %v195
    %v197 = vrot.slane %v168, %v196
    %v198 = vlaneseq
    %v199 = vshrl.u32 %v198, 7
    %v200 = vsub.s32 7, %v199
    %v201 = vrot.slane %v168, %v200
    %v210 = vmul.f32 %v160, %v173
    %v211 = vmul.f32 %v161, %v177
    %v212 = vmul.f32 %v162, %v181
    %v213 = vmul.f32 %v163, %v185
    %v214 = vmul.f32 %v164, %v189
    %v215 = vmul.f32 %v165, %v193
    %v216 = vmul.f32 %v166, %v197
    %v217 = vmul.f32 %v167, %v201
    %vm218 = vcmask 1040384
    %v219 = vsel %vm218, %v210, 0.0
    %v220 = vsel %vm218, %v211, 0.0
    %v221 = vadd.f32 %v219, %v220
    %v222 = vsel %vm218, %v212, 0.0
    %v223 = vadd.f32 %v221, %v222
    %v224 = vsel %vm218, %v213, 0.0
    %v225 = vadd.f32 %v223, %v224
    %v226 = vsel %vm218, %v214, 0.0
    %v227 = vadd.f32 %v225, %v226
    %v228 = vsel %vm218, %v215, 0.0
    %v229 = vadd.f32 %v227, %v228
    %v230 = vsel %vm218, %v216, 0.0
    %v231 = vadd.f32 %v229, %v230
    %v232 = vsel %vm218, %v217, 0.0
    %v233 = vadd.f32 %v231, %v232
    %234 = vadd.xlane.f32.xlu0 %v233
    %v235 = vpop.xlane.xlu0 %234
    %s236 = sld [smem:[#allocation2 + $0x2]]
    %v237 = vstv %s236
    %v238 = vadd.f32 %v235, %v237
    %v239 = vld [vmem:[%s3] sm:$0xff]
    %v240 = vlaneseq
    %v241 = vshrl.u32 %v240, 7
    %v242 = vsub.s32 0, %v241
    %v243 = vrot.slane %v238, %v242
    %v244 = vmul.f32 %v239, %v243
    %v245 = vlaneseq
    %v246 = vand.u32 %v245, 127
    %vm247 = vcmp.eq.s32.totalorder %v246, 4
    %v248 = vsel %vm247, 1, 0
    %v249 = vcvt.s32.f32 %v248
    %251 = vset.pattern.permute.xlu0 0
    %252 = vperm.xlu0 %251, %v244
    %v253 = vpop.permute.xlu0 %252
    %v255 = vmul.f32 %v253, %v249
    %257 = vset.pattern.permute.xlu0 1
    %258 = vperm.xlu0 %257, %v239
    %v259 = vpop.permute.xlu0 %258
    %v261 = vadd.f32 %v259, %v255
    %vm262 = vcmp.ge.s32.totalorder %v246, 3
    %vm263 = vcmp.lt.s32.totalorder %v246, 6
    %vm264 = vmand %vm262, %vm263
    %s265 = sld [smem:[#allocation2]]
    %s266 = sld [smem:[#allocation2 + $0x1]]
    %vm267 = vcmp.lt.s32.totalorder %v246, 3
    %v268 = vstv %s265
    %v269 = vstv %s266
    %v270 = vsel %vm264, %v268, %v269
    %v271 = vsel %vm267, %v238, %v270
    %v272 = vmul.f32 %v271, 0.9793241
    %v273 = vlaneseq
    %v274 = vshrl.u32 %v273, 7
    %v275 = vsub.s32 0, %v274
    %v276 = vrot.slane %v272, %v275
    %v277 = vmul.f32 %v261, %v276
    %vm278 = vcmask 72704
    %279 = vst.msk [vmem:[%s4] sm:$0xff] %vm278, %v277
    // Predicated region
    $region22: #{model_forward.1} parent=1 // pred_check
      _
    $region23: #{model_forward.1} parent=1 // pred_check_branch
      %281 = sbr.rel (0) target = $region25
    $region24: #{model_forward.1} parent=1 // pred_region
      _
    $region25: #{model_forward.1} parent=1 // pred_fallthru
      _
    // Predicated region
    $region26: #{model_forward.1} parent=1 // pred_check
      _
    $region27: #{model_forward.1} parent=1 // pred_check_branch
      %283 = sbr.rel (0) target = $region29
    $region28: #{model_forward.1} parent=1 // pred_region
      _
    $region29: #{model_forward.1} parent=1 // pred_fallthru
      _
    %284 = vsyncpa [#allocation3], 1

</llo_original>
